<compile_context>
chip_gen: v5e
topology: v5e:2x2
jax: 0.10.0
libtpu: 0.0.40
codegen_flags: <defaults>
</compile_context>

<pallas_src>
import math

import jax
import jax.numpy as jnp
from jax.experimental import pallas as pl
from jax.experimental.pallas import tpu as pltpu

_LANE = 128
_SUBLANE = 8


def _round_up(x, m):
    return (x + m - 1) // m * m


def _vmem_budget_and_limit():
    """Generation-aware (budget, compiler vmem limit) in bytes."""
    cap = None
    try:
        cap = getattr(pltpu.get_tpu_info(), "vmem_capacity_bytes", None)
    except Exception:
        cap = None
    if cap is None:
        cap = 64 * 1024 * 1024  # conservative: assume v7x-sized VMEM
    if cap >= 96 * 1024 * 1024:
        # v5e / v6e: 128 MiB physical VMEM -> large tiles, explicit limit well above
        # the small scoped defaults (16/32 MiB).
        budget = 80 * 1024 * 1024
        limit = 100 * 1024 * 1024
    else:
        # v7x: 64 MiB physical per TC -> leave headroom for compiler internal scratch.
        budget = 40 * 1024 * 1024
        limit = 52 * 1024 * 1024
    return budget, limit


def _pick_tile_n(n, d_pad, h_pad, compute_bytes, in_bytes, out_bytes, budget, align):
    """Largest token tile whose per-step VMEM footprint fits `budget`.

    Returns (tile_n, fits). Weights are single-buffered (pl.Buffered(1))."""
    # Resident, single-buffered weights + f32 biases.
    resident = 2 * d_pad * h_pad * compute_bytes + (h_pad + d_pad) * 4

    max_tile = min(1024, _round_up(n, align))
    # Guarantee >= ~4 token tiles for large n (>= 2 steps per v7x TensorCore).
    if n > 4 * align:
        max_tile = min(max_tile, max(_round_up(pl.cdiv(n, 4), align), align))

    tn = max_tile
    while True:
        per_step = (2 * tn * d_pad * in_bytes        # double-buffered x tile (native dtype)
                    + 2 * tn * d_pad * out_bytes     # double-buffered out tile
                    + tn * d_pad * compute_bytes     # in-kernel cast of x
                    + tn * h_pad * 4                 # f32 hidden intermediate
                    + tn * h_pad * compute_bytes     # recast of hidden for 2nd matmul
                    + tn * d_pad * 4)                # f32 out intermediate
        per_step = int(per_step * 1.15)              # margin for vregs / rounding
        if resident + per_step <= budget:
            return tn, True
        if tn <= align:
            return tn, False
        tn = max(_round_up(tn // 2, align), align)


def _pick_hidden_tiles(n, d_pad, h_pad, compute_bytes, in_bytes, out_bytes, budget,
                       align, tile_h=None):
    """(tile_n, tile_h) for the hidden-axis-tiled fallback path."""
    tn = min(512, _round_up(n, align))
    th = tile_h if tile_h is not None else min(h_pad, 2048)
    while True:
        per_step = (2 * tn * d_pad * in_bytes        # x tile (double-buffered)
                    + 2 * tn * d_pad * out_bytes     # out tile (double-buffered)
                    + tn * d_pad * 4                 # f32 accumulator scratch
                    + tn * d_pad * compute_bytes     # x cast
                    + 2 * d_pad * th * compute_bytes # w1 tile (double-buffered)
                    + 2 * th * d_pad * compute_bytes # w2 tile (double-buffered)
                    + 2 * th * 4 + d_pad * 4         # b1 tile + pinned b2
                    + tn * th * 4                    # f32 hidden intermediate
                    + tn * th * compute_bytes)       # hidden recast
        per_step = int(per_step * 1.15)
        if per_step <= budget:
            return tn, th
        if tile_h is None and th > _LANE:
            th = max(_LANE, th // 2)
        elif tn > align:
            tn = max(_round_up(tn // 2, align), align)
        else:
            return tn, th  # best effort


def _ffn_kernel(x_ref, w1_ref, b1_ref, w2_ref, b2_ref, o_ref):
    # x_ref:  (TILE_N, d_pad)  native dtype (cast to compute dtype inside)
    # w1_ref: (d_pad, h_pad)   compute dtype, pinned (Buffered(1))
    # b1_ref: (1, h_pad)       f32, pinned
    # w2_ref: (h_pad, d_pad)   compute dtype, pinned
    # b2_ref: (1, d_pad)       f32, pinned
    # o_ref:  (TILE_N, d_pad)  out dtype
    x = x_ref[...].astype(w1_ref.dtype)
    h = jnp.dot(x, w1_ref[...], preferred_element_type=jnp.float32) + b1_ref[...]
    h = jnp.maximum(h, 0.0)                      # dropout == identity (eval), then relu
    out = jnp.dot(h.astype(w2_ref.dtype), w2_ref[...],
                  preferred_element_type=jnp.float32) + b2_ref[...]
    o_ref[...] = out.astype(o_ref.dtype)


def _ffn_hidden_tiled_kernel(x_ref, w1_ref, b1_ref, w2_ref, b2_ref, o_ref, acc_ref):
    # grid = (token tiles [parallel], hidden tiles [arbitrary, reduction])
    j = pl.program_id(1)

    @pl.when(j == 0)
    def _():
        acc_ref[...] = jnp.zeros_like(acc_ref)

    x = x_ref[...].astype(w1_ref.dtype)
    h = jnp.dot(x, w1_ref[...], preferred_element_type=jnp.float32) + b1_ref[...]
    h = jnp.maximum(h, 0.0)
    acc_ref[...] += jnp.dot(h.astype(w2_ref.dtype), w2_ref[...],
                            preferred_element_type=jnp.float32)

    @pl.when(j == pl.num_programs(1) - 1)
    def _():
        o_ref[...] = (acc_ref[...] + b2_ref[...]).astype(o_ref.dtype)


def positionwise_feed_forward(x, w1, b1, w2, b2, *, compute_dtype=jnp.bfloat16,
                              out_dtype=None, vmem_budget_bytes=None, hidden_tile=None):
    """x: (..., d_model); w1: (d_model, hidden); w2: (hidden, d_model).

    Weights are pre-transposed relative to PyTorch's (out, in) convention so both
    matmuls are plain row-major MXU dots. Default compute path is bf16 with f32
    accumulation (inference-grade accuracy); pass compute_dtype=jnp.float32 for
    validation-grade parity. out_dtype=jnp.bfloat16 halves output HBM traffic when
    the consumer accepts bf16.
    """
    d_model = x.shape[-1]
    hidden = w1.shape[-1]
    lead = x.shape[:-1]
    n = math.prod(lead) if lead else 1

    out_dtype = x.dtype if out_dtype is None else out_dtype
    compute_bytes = jnp.dtype(compute_dtype).itemsize
    in_bytes = jnp.dtype(x.dtype).itemsize
    out_bytes = jnp.dtype(out_dtype).itemsize
    align = _SUBLANE * max(1, 4 // compute_bytes)   # 8 rows for f32, 16 for bf16

    budget_default, vmem_limit = _vmem_budget_and_limit()
    budget = budget_default if vmem_budget_bytes is None else vmem_budget_bytes
    vmem_limit = max(vmem_limit, budget)

    d_pad = _round_up(d_model, _LANE)
    h_pad = _round_up(hidden, _LANE)

    if hidden_tile is not None:
        tile_h_req = min(_round_up(hidden_tile, _LANE), h_pad)
        tile_n, tile_h = _pick_hidden_tiles(n, d_pad, h_pad, compute_bytes, in_bytes,
                                            out_bytes, budget, align, tile_h=tile_h_req)
        use_hidden = True
    else:
        tile_n, fits = _pick_tile_n(n, d_pad, h_pad, compute_bytes, in_bytes,
                                    out_bytes, budget, align)
        use_hidden = (not fits) and (h_pad > _LANE)
        if use_hidden:
            tile_n, tile_h = _pick_hidden_tiles(n, d_pad, h_pad, compute_bytes,
                                                in_bytes, out_bytes, budget, align)

    if use_hidden:
        h_pad = _round_up(h_pad, tile_h)  # make the hidden grid axis exact

    n_pad = _round_up(n, tile_n)

    # x stays in its native dtype (cast happens inside the kernel); pad only if needed.
    x2d = x.reshape(n, d_model)
    if n_pad != n or d_pad != d_model:
        x2d = jnp.pad(x2d, ((0, n_pad - n), (0, d_pad - d_model)))

    w1p = jnp.pad(w1, ((0, d_pad - d_model), (0, h_pad - hidden))).astype(compute_dtype)
    w2p = jnp.pad(w2, ((0, h_pad - hidden), (0, d_pad - d_model))).astype(compute_dtype)
    b1p = jnp.pad(b1.astype(jnp.float32).reshape(1, hidden),
                  ((0, 0), (0, h_pad - hidden)))
    b2p = jnp.pad(b2.astype(jnp.float32).reshape(1, d_model),
                  ((0, 0), (0, d_pad - d_model)))

    pinned = pl.Buffered(1)

    if not use_hidden:
        out = pl.pallas_call(
            _ffn_kernel,
            out_shape=jax.ShapeDtypeStruct((n_pad, d_pad), out_dtype),
            grid_spec=pltpu.PrefetchScalarGridSpec(
                num_scalar_prefetch=0,
                grid=(n_pad // tile_n,),
                in_specs=[
                    pl.BlockSpec((tile_n, d_pad), lambda i: (i, 0)),   # x: token tiles
                    pl.BlockSpec((d_pad, h_pad), lambda i: (0, 0),
                                 pipeline_mode=pinned),                # w1: pinned
                    pl.BlockSpec((1, h_pad), lambda i: (0, 0),
                                 pipeline_mode=pinned),                # b1: pinned
                    pl.BlockSpec((h_pad, d_pad), lambda i: (0, 0),
                                 pipeline_mode=pinned),                # w2: pinned
                    pl.BlockSpec((1, d_pad), lambda i: (0, 0),
                                 pipeline_mode=pinned),                # b2: pinned
                ],
                out_specs=pl.BlockSpec((tile_n, d_pad), lambda i: (i, 0)),
            ),
            compiler_params=pltpu.CompilerParams(
                dimension_semantics=("parallel",),       # megacore sharding on v7x
                vmem_limit_bytes=vmem_limit,
            ),
        )(x2d, w1p, b1p, w2p, b2p)
    else:
        out = pl.pallas_call(
            _ffn_hidden_tiled_kernel,
            out_shape=jax.ShapeDtypeStruct((n_pad, d_pad), out_dtype),
            grid_spec=pltpu.PrefetchScalarGridSpec(
                num_scalar_prefetch=0,
                grid=(n_pad // tile_n, h_pad // tile_h),
                in_specs=[
                    pl.BlockSpec((tile_n, d_pad), lambda i, j: (i, 0)),  # x
                    pl.BlockSpec((d_pad, tile_h), lambda i, j: (0, j)),  # w1 hidden tile
                    pl.BlockSpec((1, tile_h), lambda i, j: (0, j)),      # b1 hidden tile
                    pl.BlockSpec((tile_h, d_pad), lambda i, j: (j, 0)),  # w2 hidden tile
                    pl.BlockSpec((1, d_pad), lambda i, j: (0, 0),
                                 pipeline_mode=pinned),                  # b2: pinned
                ],
                out_specs=pl.BlockSpec((tile_n, d_pad), lambda i, j: (i, 0)),
                scratch_shapes=[pltpu.VMEM((tile_n, d_pad), jnp.float32)],
            ),
            compiler_params=pltpu.CompilerParams(
                dimension_semantics=("parallel", "arbitrary"),
                vmem_limit_bytes=vmem_limit,
            ),
        )(x2d, w1p, b1p, w2p, b2p)

    if n_pad != n or d_pad != d_model:
        out = out[:n, :d_model]
    return out.reshape(*lead, d_model)


if __name__ == "__main__":
    # Small shapes consistent with the module: tokens of width d_model.
    batch, seq, d_model, hidden = 2, 8, 32, 64

    key = jax.random.PRNGKey(0)
    kx, kw1, kb1, kw2, kb2 = jax.random.split(key, 5)

    # Deterministic init mimicking nn.Linear's U(-1/sqrt(fan_in), 1/sqrt(fan_in)).
    lim1 = 1.0 / (d_model ** 0.5)
    lim2 = 1.0 / (hidden ** 0.5)
    # Weights stored pre-transposed relative to PyTorch's (out, in) convention.
    w1 = jax.random.uniform(kw1, (d_model, hidden), jnp.float32, -lim1, lim1)
    b1 = jax.random.uniform(kb1, (hidden,), jnp.float32, -lim1, lim1)
    w2 = jax.random.uniform(kw2, (hidden, d_model), jnp.float32, -lim2, lim2)
    b2 = jax.random.uniform(kb2, (d_model,), jnp.float32, -lim2, lim2)

    x = jax.random.normal(kx, (batch, seq, d_model), jnp.float32)

    # Pure-JAX f32 reference (eval-mode dropout == identity).
    ref_f32 = jnp.maximum(x @ w1 + b1, 0.0) @ w2 + b2

    # 1) f32 compute path, single-pass kernel: tight match.
    out_f32 = jax.block_until_ready(
        positionwise_feed_forward(x, w1, b1, w2, b2, compute_dtype=jnp.float32))
    assert out_f32.shape == (batch, seq, d_model)
    assert jnp.allclose(out_f32, ref_f32, atol=1e-5, rtol=1e-5)

    # 2) bf16 compute path (default): tight match vs a reference with identical casts,
    #    loose match vs the pure-f32 reference.
    out_bf16 = jax.block_until_ready(positionwise_feed_forward(x, w1, b1, w2, b2))
    xb = x.reshape(-1, d_model).astype(jnp.bfloat16)
    h_ref = jnp.dot(xb, w1.astype(jnp.bfloat16), preferred_element_type=jnp.float32) + b1
    h_ref = jnp.maximum(h_ref, 0.0)
    ref_bf16 = (jnp.dot(h_ref.astype(jnp.bfloat16), w2.astype(jnp.bfloat16),
                        preferred_element_type=jnp.float32) + b2).reshape(x.shape)
    assert out_bf16.shape == (batch, seq, d_model)
    assert jnp.allclose(out_bf16, ref_bf16, atol=1e-3, rtol=1e-3)
    assert jnp.allclose(out_bf16, ref_f32, atol=5e-2, rtol=5e-2)

    # 3) bf16 output (halved writeback): loose match vs the f32 reference.
    out_bf16_o = jax.block_until_ready(
        positionwise_feed_forward(x, w1, b1, w2, b2, out_dtype=jnp.bfloat16))
    assert out_bf16_o.dtype == jnp.bfloat16
    assert jnp.allclose(out_bf16_o.astype(jnp.float32), ref_f32, atol=7.5e-2, rtol=7.5e-2)

    # 4) Hidden-axis-tiled fallback path (multi-step reduction over the hidden dim),
    #    validated tightly in f32 with a wider hidden so the hidden grid axis has >1 step.
    hidden2 = 256
    kw3, kb3, kw4, kb4 = jax.random.split(jax.random.PRNGKey(1), 4)
    lim1b = 1.0 / (d_model ** 0.5)
    lim2b = 1.0 / (hidden2 ** 0.5)
    w1b = jax.random.uniform(kw3, (d_model, hidden2), jnp.float32, -lim1b, lim1b)
    b1b = jax.random.uniform(kb3, (hidden2,), jnp.float32, -lim1b, lim1b)
    w2b = jax.random.uniform(kw4, (hidden2, d_model), jnp.float32, -lim2b, lim2b)
    b2b = jax.random.uniform(kb4, (d_model,), jnp.float32, -lim2b, lim2b)
    ref2_f32 = jnp.maximum(x @ w1b + b1b, 0.0) @ w2b + b2b
    out_ht = jax.block_until_ready(
        positionwise_feed_forward(x, w1b, b1b, w2b, b2b, compute_dtype=jnp.float32,
                                  hidden_tile=128))
    assert out_ht.shape == (batch, seq, d_model)
    assert jnp.allclose(out_ht, ref2_f32, atol=1e-5, rtol=1e-5)

    print("KERNEL_OK")
</pallas_src>

<mosaic_0001>
module attributes {stable_mosaic.version = 11 : i64} {
  func.func @_ffn_kernel(%arg0: i32, %arg1: memref<16x128xf32, #tpu.memory_space<vmem>>, %arg2: memref<128x128xf32, #tpu.memory_space<vmem>>, %arg3: memref<1x128xf32, #tpu.memory_space<vmem>>, %arg4: memref<128x128xf32, #tpu.memory_space<vmem>>, %arg5: memref<1x128xf32, #tpu.memory_space<vmem>>, %arg6: memref<16x128xf32, #tpu.memory_space<vmem>>) attributes {dimension_semantics = [#tpu.dimension_semantics<parallel>], iteration_bounds = array<i64: 1>, scalar_prefetch = 0 : i64, scratch_operands = 0 : i64, tpu.core_type = #tpu.core_type<tc>, window_params = [{transform_indices = @transform_0, window_bounds = array<i64: 16, 128>}, {pipeline_mode = #tpu.pipeline_mode<synchronous>, transform_indices = @transform_1, window_bounds = array<i64: 128, 128>}, {pipeline_mode = #tpu.pipeline_mode<synchronous>, transform_indices = @transform_2, window_bounds = array<i64: 1, 128>}, {pipeline_mode = #tpu.pipeline_mode<synchronous>, transform_indices = @transform_3, window_bounds = array<i64: 128, 128>}, {pipeline_mode = #tpu.pipeline_mode<synchronous>, transform_indices = @transform_4, window_bounds = array<i64: 1, 128>}, {transform_indices = @transform_5, window_bounds = array<i64: 16, 128>}]} {
    %c0 = arith.constant 0 : index
    %c0_0 = arith.constant 0 : index
    %0 = vector.load %arg1[%c0, %c0_0] : memref<16x128xf32, #tpu.memory_space<vmem>>, vector<16x128xf32>
    %c0_1 = arith.constant 0 : index
    %c0_2 = arith.constant 0 : index
    %1 = vector.load %arg2[%c0_1, %c0_2] : memref<128x128xf32, #tpu.memory_space<vmem>>, vector<128x128xf32>
    %cst = arith.constant dense<0.000000e+00> : vector<16x128xf32>
    %2 = tpu.matmul %0, %1, %cst {dimension_numbers = #tpu.dot_dimension_numbers<[1], [0], [0], [1], [0, 0, 1, 1], [], []>} : vector<16x128xf32>, vector<128x128xf32>, vector<16x128xf32> -> vector<16x128xf32>
    %c0_3 = arith.constant 0 : index
    %c0_4 = arith.constant 0 : index
    %3 = vector.load %arg3[%c0_3, %c0_4] : memref<1x128xf32, #tpu.memory_space<vmem>>, vector<1x128xf32>
    %4 = vector.broadcast %3 : vector<1x128xf32> to vector<16x128xf32>
    %5 = arith.addf %2, %4 : vector<16x128xf32>
    %cst_5 = arith.constant 0.000000e+00 : f32
    %6 = vector.broadcast %cst_5 : f32 to vector<16x128xf32>
    %7 = arith.maximumf %5, %6 : vector<16x128xf32>
    %c0_6 = arith.constant 0 : index
    %c0_7 = arith.constant 0 : index
    %8 = vector.load %arg4[%c0_6, %c0_7] : memref<128x128xf32, #tpu.memory_space<vmem>>, vector<128x128xf32>
    %cst_8 = arith.constant dense<0.000000e+00> : vector<16x128xf32>
    %9 = tpu.matmul %7, %8, %cst_8 {dimension_numbers = #tpu.dot_dimension_numbers<[1], [0], [0], [1], [0, 0, 1, 1], [], []>} : vector<16x128xf32>, vector<128x128xf32>, vector<16x128xf32> -> vector<16x128xf32>
    %c0_9 = arith.constant 0 : index
    %c0_10 = arith.constant 0 : index
    %10 = vector.load %arg5[%c0_9, %c0_10] : memref<1x128xf32, #tpu.memory_space<vmem>>, vector<1x128xf32>
    %11 = vector.broadcast %10 : vector<1x128xf32> to vector<16x128xf32>
    %12 = arith.addf %9, %11 : vector<16x128xf32>
    %c0_11 = arith.constant 0 : index
    %c0_12 = arith.constant 0 : index
    %13 = vector.load %arg6[%c0_11, %c0_12] : memref<16x128xf32, #tpu.memory_space<vmem>>, vector<16x128xf32>
    tpu.vector_store %arg6[%c0_11, %c0_12], %12 {strides = array<i32>} : memref<16x128xf32, #tpu.memory_space<vmem>>, vector<16x128xf32>,
    return
  }
  func.func @transform_0(%arg0: i32) -> (i32, i32) {
    %c0_i32 = arith.constant 0 : i32
    %c0_i32_0 = arith.constant 0 : i32
    return %arg0, %c0_i32 : i32, i32
  }
  func.func @transform_1(%arg0: i32) -> (i32, i32) {
    %c0_i32 = arith.constant 0 : i32
    %c0_i32_0 = arith.constant 0 : i32
    %c0_i32_1 = arith.constant 0 : i32
    return %c0_i32, %c0_i32_0 : i32, i32
  }
  func.func @transform_2(%arg0: i32) -> (i32, i32) {
    %c0_i32 = arith.constant 0 : i32
    %c0_i32_0 = arith.constant 0 : i32
    %c0_i32_1 = arith.constant 0 : i32
    return %c0_i32, %c0_i32_0 : i32, i32
  }
  func.func @transform_3(%arg0: i32) -> (i32, i32) {
    %c0_i32 = arith.constant 0 : i32
    %c0_i32_0 = arith.constant 0 : i32
    %c0_i32_1 = arith.constant 0 : i32
    return %c0_i32, %c0_i32_0 : i32, i32
  }
  func.func @transform_4(%arg0: i32) -> (i32, i32) {
    %c0_i32 = arith.constant 0 : i32
    %c0_i32_0 = arith.constant 0 : i32
    %c0_i32_1 = arith.constant 0 : i32
    return %c0_i32, %c0_i32_0 : i32, i32
  }
  func.func @transform_5(%arg0: i32) -> (i32, i32) {
    %c0_i32 = arith.constant 0 : i32
    %c0_i32_0 = arith.constant 0 : i32
    return %arg0, %c0_i32 : i32, i32
  }
}

</mosaic_0001>

<llo_original>
// kernel: tpu_custom_call.1
$region0: #{tpu_custom_call.1}
  #allocation0 [shape = 'u32[]', space=smem, size = 0x4, offset = 0x4, fixed_abs, tag = 'smem constant byte address 0x4 - core index']
  #allocation1 [shape = 'u32[72,128]{1,0:T(1,128)}', space=vmem, size = 0x9000, scoped, tag = 'internal scratch']
  %s0 = inlined_call_operand.hbm [shape: f32[16,128], index: 0, kind: input, shape index: {}]
  %s1 = inlined_call_operand.hbm [shape: f32[128,128], index: 1, kind: input, shape index: {}]
  %s2 = inlined_call_operand.vmem [shape: f32[1,128], index: 2, kind: input, shape index: {}]
  %s3 = inlined_call_operand.hbm [shape: f32[128,128], index: 3, kind: input, shape index: {}]
  %s4 = inlined_call_operand.vmem [shape: f32[1,128], index: 4, kind: input, shape index: {}]
  %s5 = inlined_call_operand.hbm [shape: f32[16,128], index: 5, kind: output, shape index: {}]
  %s6 = sld [smem:[#allocation0]]
  $region42: #{tpu_custom_call.1} parent=0
    _
  %s8 = ssub.s32 1, %s6
  %s9 = scalar_select 0, %s8, %s6
  $region1: #{tpu_custom_call.1} parent=0
    #allocation2 [shape = 'u8[8192]{0}', space=vmem, size = 0x2000, scoped, tag = 'input window, operand 0, single buffered']
    #allocation3 [shape = 's32[1]{0}', space=sflag, size = 0x4, scoped, tag = 'scoped memory for tpu_custom_call.1']
    #allocation4 [shape = 's32[1]{0}', space=sflag, size = 0x4, scoped, tag = 'scoped memory for tpu_custom_call.1']
    #allocation5 [shape = 'u8[65536]{0}', space=vmem, size = 0x10000, scoped, tag = 'input window, operand 1, single buffered']
    #allocation6 [shape = 's32[1]{0}', space=sflag, size = 0x4, scoped, tag = 'scoped memory for tpu_custom_call.1']
    #allocation7 [shape = 'u8[65536]{0}', space=vmem, size = 0x10000, scoped, tag = 'input window, operand 3, single buffered']
    #allocation8 [shape = 'u8[8192]{0}', space=vmem, size = 0x2000, scoped, tag = 'output window, operand 0, single buffered']
    %10 = vsyncpa [#allocation3], 0
    %11 = vsyncpa [#allocation6], 0
    %12 = vsyncpa [#allocation4], 0
    // Predicated region
    $region2: #{tpu_custom_call.1} parent=1 // pred_check
      _
    $region3: #{tpu_custom_call.1} parent=1 // pred_check_branch
      %14 = sbr.rel (0) target = $region5
    $region4: #{tpu_custom_call.1} parent=1 // pred_region
      %16 = vsyncadd [#allocation3], 0
      %s17 = sshll.u32 %s0, 4
      %s18 = int_to_ptr.hbm [resolvable:$true] %s17
      %s19 = sshll.u32 [#allocation2], 4
      %s20 = int_to_ptr.vmem [resolvable:$true] %s19
      %25 = dma.hbm_to_vmem [thread:$0]  %s18, 256, %s20, [#allocation3], 128, 128, 8
    $region5: #{tpu_custom_call.1} parent=1 // pred_fallthru
      _
    // Predicated region
    $region6: #{tpu_custom_call.1} parent=1 // pred_check
      _
    $region7: #{tpu_custom_call.1} parent=1 // pred_check_branch
      %27 = sbr.rel (0) target = $region9
    $region8: #{tpu_custom_call.1} parent=1 // pred_region
      %29 = vsyncadd [#allocation6], 0
      %s30 = sshll.u32 %s1, 4
      %s31 = int_to_ptr.hbm [resolvable:$true] %s30
      %s32 = sshll.u32 [#allocation5], 4
      %s33 = int_to_ptr.vmem [resolvable:$true] %s32
      %38 = dma.hbm_to_vmem [thread:$0]  %s31, 2048, %s33, [#allocation6], 128, 128, 8
    $region9: #{tpu_custom_call.1} parent=1 // pred_fallthru
      _
    // Predicated region
    $region10: #{tpu_custom_call.1} parent=1 // pred_check
      _
    $region11: #{tpu_custom_call.1} parent=1 // pred_check_branch
      %40 = sbr.rel (0) target = $region13
    $region12: #{tpu_custom_call.1} parent=1 // pred_region
      _
    $region13: #{tpu_custom_call.1} parent=1 // pred_fallthru
      _
    // Predicated region
    $region14: #{tpu_custom_call.1} parent=1 // pred_check
      _
    $region15: #{tpu_custom_call.1} parent=1 // pred_check_branch
      %42 = sbr.rel (0) target = $region17
    $region16: #{tpu_custom_call.1} parent=1 // pred_region
      %44 = vsyncadd [#allocation6], 0
      %s45 = sshll.u32 %s3, 4
      %s46 = int_to_ptr.hbm [resolvable:$true] %s45
      %s47 = sshll.u32 [#allocation7], 4
      %s48 = int_to_ptr.vmem [resolvable:$true] %s47
      %53 = dma.hbm_to_vmem [thread:$0]  %s46, 2048, %s48, [#allocation6], 128, 128, 8
    $region17: #{tpu_custom_call.1} parent=1 // pred_fallthru
      _
    // Predicated region
    $region18: #{tpu_custom_call.1} parent=1 // pred_check
      _
    $region19: #{tpu_custom_call.1} parent=1 // pred_check_branch
      %55 = sbr.rel (0) target = $region21
    $region20: #{tpu_custom_call.1} parent=1 // pred_region
      _
    $region21: #{tpu_custom_call.1} parent=1 // pred_fallthru
      _
    // Predicated region
    $region22: #{tpu_custom_call.1} parent=1 // pred_check
      _
    $region23: #{tpu_custom_call.1} parent=1 // pred_check_branch
      %57 = sbr.rel (0) target = $region25
    $region24: #{tpu_custom_call.1} parent=1 // pred_region
      %59 = dma.done [#allocation3], 256
    $region25: #{tpu_custom_call.1} parent=1 // pred_fallthru
      _
    // Predicated region
    $region26: #{tpu_custom_call.1} parent=1 // pred_check
      _
    $region27: #{tpu_custom_call.1} parent=1 // pred_check_branch
      %61 = sbr.rel (0) target = $region29
    $region28: #{tpu_custom_call.1} parent=1 // pred_region
      %63 = dma.done [#allocation6], 2048
    $region29: #{tpu_custom_call.1} parent=1 // pred_fallthru
      _
    // Predicated region
    $region30: #{tpu_custom_call.1} parent=1 // pred_check
      _
    $region31: #{tpu_custom_call.1} parent=1 // pred_check_branch
      %65 = sbr.rel (0) target = $region33
    $region32: #{tpu_custom_call.1} parent=1 // pred_region
      %67 = dma.done [#allocation6], 2048
    $region33: #{tpu_custom_call.1} parent=1 // pred_fallthru
      _
    %v68 = vld [vmem:[#allocation2] sm:$0xff]
    %v69 = vld [vmem:[#allocation2 + $0x8] sm:$0xff]
    %v70 = vld [vmem:[#allocation5] sm:$0xff]
    %v71 = vld [vmem:[#allocation5 + $0x8] sm:$0xff]
    %v72 = vld [vmem:[#allocation5 + $0x10] sm:$0xff]
    %v73 = vld [vmem:[#allocation5 + $0x18] sm:$0xff]
    %v74 = vld [vmem:[#allocation5 + $0x20] sm:$0xff]
    %v75 = vld [vmem:[#allocation5 + $0x28] sm:$0xff]
    %v76 = vld [vmem:[#allocation5 + $0x30] sm:$0xff]
    %v77 = vld [vmem:[#allocation5 + $0x38] sm:$0xff]
    %v78 = vld [vmem:[#allocation5 + $0x40] sm:$0xff]
    %v79 = vld [vmem:[#allocation5 + $0x48] sm:$0xff]
    %v80 = vld [vmem:[#allocation5 + $0x50] sm:$0xff]
    %v81 = vld [vmem:[#allocation5 + $0x58] sm:$0xff]
    %v82 = vld [vmem:[#allocation5 + $0x60] sm:$0xff]
    %v83 = vld [vmem:[#allocation5 + $0x68] sm:$0xff]
    %v84 = vld [vmem:[#allocation5 + $0x70] sm:$0xff]
    %v85 = vld [vmem:[#allocation5 + $0x78] sm:$0xff]
    %v86 = vld [vmem:[%s2] sm:$0x1]
    %v88 = vperm.slane %v86, 0
    %90 = vmatpush.msra.mxu0 %v85
    %91 = vmatpush.msra.mxu0 %v84
    %92 = vmatpush.msra.mxu0 %v83
    %93 = vmatpush.msra.mxu0 %v82
    %94 = vmatpush.msra.mxu0 %v81
    %95 = vmatpush.msra.mxu0 %v80
    %96 = vmatpush.msra.mxu0 %v79
    %97 = vmatpush.msra.mxu0 %v78
    %98 = vmatpush.msra.mxu0 %v77
    %99 = vmatpush.msra.mxu0 %v76
    %100 = vmatpush.msra.mxu0 %v75
    %101 = vmatpush.msra.mxu0 %v74
    %102 = vmatpush.msra.mxu0 %v73
    %103 = vmatpush.msra.mxu0 %v72
    %104 = vmatpush.msra.mxu0 %v71
    %105 = vmatpush.msra.mxu0 %v70
    %106 = vmatmul.f32.gmra.mxu0 %v68
    %v107 = vpop.f32.mrf.mxu0
    %v108 = vadd.f32 %v88, %v107
    %109 = vmatmul.f32.gmra.mxu0 %v69
    %v110 = vpop.f32.mrf.mxu0
    %v111 = vadd.f32 %v88, %v110
    %112 = vdwg.mxu0
    %v113 = vmax.f32 %v108, 0.0
    %v114 = vmax.f32 %v111, 0.0
    %v115 = vld [vmem:[#allocation7] sm:$0xff]
    %v116 = vld [vmem:[#allocation7 + $0x8] sm:$0xff]
    %v117 = vld [vmem:[#allocation7 + $0x10] sm:$0xff]
    %v118 = vld [vmem:[#allocation7 + $0x18] sm:$0xff]
    %v119 = vld [vmem:[#allocation7 + $0x20] sm:$0xff]
    %v120 = vld [vmem:[#allocation7 + $0x28] sm:$0xff]
    %v121 = vld [vmem:[#allocation7 + $0x30] sm:$0xff]
    %v122 = vld [vmem:[#allocation7 + $0x38] sm:$0xff]
    %v123 = vld [vmem:[#allocation7 + $0x40] sm:$0xff]
    %v124 = vld [vmem:[#allocation7 + $0x48] sm:$0xff]
    %v125 = vld [vmem:[#allocation7 + $0x50] sm:$0xff]
    %v126 = vld [vmem:[#allocation7 + $0x58] sm:$0xff]
    %v127 = vld [vmem:[#allocation7 + $0x60] sm:$0xff]
    %v128 = vld [vmem:[#allocation7 + $0x68] sm:$0xff]
    %v129 = vld [vmem:[#allocation7 + $0x70] sm:$0xff]
    %v130 = vld [vmem:[#allocation7 + $0x78] sm:$0xff]
    %v131 = vld [vmem:[%s4] sm:$0x1]
    %v133 = vperm.slane %v131, 0
    %135 = vmatpush.msra.mxu0 %v130
    %136 = vmatpush.msra.mxu0 %v129
    %137 = vmatpush.msra.mxu0 %v128
    %138 = vmatpush.msra.mxu0 %v127
    %139 = vmatpush.msra.mxu0 %v126
    %140 = vmatpush.msra.mxu0 %v125
    %141 = vmatpush.msra.mxu0 %v124
    %142 = vmatpush.msra.mxu0 %v123
    %143 = vmatpush.msra.mxu0 %v122
    %144 = vmatpush.msra.mxu0 %v121
    %145 = vmatpush.msra.mxu0 %v120
    %146 = vmatpush.msra.mxu0 %v119
    %147 = vmatpush.msra.mxu0 %v118
    %148 = vmatpush.msra.mxu0 %v117
    %149 = vmatpush.msra.mxu0 %v116
    %150 = vmatpush.msra.mxu0 %v115
    %151 = vmatmul.f32.gmra.mxu0 %v113
    %v152 = vpop.f32.mrf.mxu0
    %v153 = vadd.f32 %v133, %v152
    %154 = vmatmul.f32.gmra.mxu0 %v114
    %v155 = vpop.f32.mrf.mxu0
    %v156 = vadd.f32 %v133, %v155
    %157 = vdwg.mxu0
    %158 = vst [vmem:[#allocation8] sm:$0xff] %v153
    %159 = vst [vmem:[#allocation8 + $0x8] sm:$0xff] %v156
    // Predicated region
    $region34: #{tpu_custom_call.1} parent=1 // pred_check
      _
    $region35: #{tpu_custom_call.1} parent=1 // pred_check_branch
      %161 = sbr.rel (0) target = $region37
    $region36: #{tpu_custom_call.1} parent=1 // pred_region
      %163 = vsyncadd [#allocation4], 0
      %s164 = sshll.u32 [#allocation8], 4
      %s165 = int_to_ptr.vmem [resolvable:$true] %s164
      %s166 = sshll.u32 %s5, 4
      %s167 = int_to_ptr.hbm [resolvable:$true] %s166
      %172 = dma.vmem_to_hbm [thread:$0]  %s165, 256, %s167, [#allocation4], 128, 128, 8
    $region37: #{tpu_custom_call.1} parent=1 // pred_fallthru
      _
    // Predicated region
    $region38: #{tpu_custom_call.1} parent=1 // pred_check
      _
    $region39: #{tpu_custom_call.1} parent=1 // pred_check_branch
      %174 = sbr.rel (0) target = $region41
    $region40: #{tpu_custom_call.1} parent=1 // pred_region
      %176 = dma.done [#allocation4], 256
    $region41: #{tpu_custom_call.1} parent=1 // pred_fallthru
      _
    %177 = vsyncpa [#allocation3], 1
    %178 = vsyncpa [#allocation6], 1
    %179 = vsyncpa [#allocation4], 1

</llo_original>
